<compile_context>
chip_gen: v7x
topology: tpu7x:2x2x1
jax: 0.10.0
libtpu: 0.0.40
codegen_flags: <defaults>
</compile_context>

<pallas_src>
import functools

import jax
import jax.numpy as jnp
from jax.experimental import pallas as pl
from jax.experimental.pallas import tpu as pltpu


def _round_up(n, m):
    return ((n + m - 1) // m) * m


# ------------------------------- kernels -------------------------------------

def _coupling_kernel_blockdiag(zT_ref, maskT_ref, w1_ref, b1_ref, w2_ref,
                               b2_ref, w3_ref, b3_ref, xT_ref, ld_ref, *,
                               data_dim):
    """s/b nets fused into ONE 3-matmul MLP (layer-1 concat, 2/3 block-diag)."""
    z = zT_ref[...]                          # (D, TB) f32, batch on lanes
    mask = maskT_ref[...]                    # (D, 1)  f32, broadcasts over lanes
    inv_mask = 1.0 - mask
    z_a = z * mask

    h = jnp.dot(w1_ref[...], z_a.astype(w1_ref.dtype),
                preferred_element_type=jnp.float32) + b1_ref[...]    # (2H, TB)
    h = jnp.maximum(h, 0.0)
    h = jnp.dot(w2_ref[...], h.astype(w2_ref.dtype),
                preferred_element_type=jnp.float32) + b2_ref[...]    # (2H, TB)
    h = jnp.maximum(h, 0.0)
    sb = jnp.dot(w3_ref[...], h.astype(w3_ref.dtype),
                 preferred_element_type=jnp.float32) + b3_ref[...]   # (2D, TB)

    s = sb[:data_dim, :]                     # (D, TB)
    b = sb[data_dim:, :]                     # (D, TB)
    xT_ref[...] = z_a + inv_mask * (z * jnp.exp(s) + b)              # lane-dense
    ld_ref[...] = jnp.sum(inv_mask * s, axis=0, keepdims=True)       # (1, TB)


def _coupling_kernel_split(zT_ref, maskT_ref, w1_ref, b1_ref,
                           w2s_ref, b2s_ref, w2b_ref, b2b_ref,
                           w3s_ref, b3s_ref, w3b_ref, b3b_ref,
                           xT_ref, ld_ref, *, data_dim, hidden_dim):
    """Layer 1 concatenated; layers 2/3 as separate per-group matmuls (big H)."""
    z = zT_ref[...]
    mask = maskT_ref[...]
    inv_mask = 1.0 - mask
    z_a = z * mask

    h = jnp.dot(w1_ref[...], z_a.astype(w1_ref.dtype),
                preferred_element_type=jnp.float32) + b1_ref[...]    # (2H, TB)
    h = jnp.maximum(h, 0.0)
    hs = h[:hidden_dim, :]
    hb = h[hidden_dim:, :]
    hs = jnp.maximum(
        jnp.dot(w2s_ref[...], hs.astype(w2s_ref.dtype),
                preferred_element_type=jnp.float32) + b2s_ref[...], 0.0)
    hb = jnp.maximum(
        jnp.dot(w2b_ref[...], hb.astype(w2b_ref.dtype),
                preferred_element_type=jnp.float32) + b2b_ref[...], 0.0)
    s = jnp.dot(w3s_ref[...], hs.astype(w3s_ref.dtype),
                preferred_element_type=jnp.float32) + b3s_ref[...]   # (D, TB)
    b = jnp.dot(w3b_ref[...], hb.astype(w3b_ref.dtype),
                preferred_element_type=jnp.float32) + b3b_ref[...]   # (D, TB)

    xT_ref[...] = z_a + inv_mask * (z * jnp.exp(s) + b)
    ld_ref[...] = jnp.sum(inv_mask * s, axis=0, keepdims=True)


# ------------------------ one-time weight packing -----------------------------

def fuse_coupling_params(s_params, b_params, mask, *, dot_dtype=jnp.float32,
                         block_diag=None):
    """Pack the s/b nets once per layer (hoisted off the per-forward path)."""
    f32 = jnp.float32
    H, D = s_params["w1"].shape
    if block_diag is None:
        # Block-diag packing saves MXU issues but doubles MACs; only keep it
        # while 2H is well inside one MXU pass on every generation
        # (v5e crossover ~H>=64, v6e/v7x ~H>=128 — be conservative).
        block_diag = H < 64

    w1 = jnp.concatenate([s_params["w1"], b_params["w1"]], axis=0)        # (2H, D)
    b1 = jnp.concatenate([s_params["b1"], b_params["b1"]])[:, None]       # (2H, 1)

    if block_diag:
        zhh = jnp.zeros((H, H), f32)
        zdh = jnp.zeros((D, H), f32)
        w2 = jnp.concatenate(
            [jnp.concatenate([s_params["w2"], zhh], axis=1),
             jnp.concatenate([zhh, b_params["w2"]], axis=1)], axis=0)     # (2H, 2H)
        b2 = jnp.concatenate([s_params["b2"], b_params["b2"]])[:, None]   # (2H, 1)
        w3 = jnp.concatenate(
            [jnp.concatenate([s_params["w3"], zdh], axis=1),
             jnp.concatenate([zdh, b_params["w3"]], axis=1)], axis=0)     # (2D, 2H)
        b3 = jnp.concatenate([s_params["b3"], b_params["b3"]])[:, None]   # (2D, 1)
        arrays = (w1.astype(dot_dtype), b1.astype(f32),
                  w2.astype(dot_dtype), b2.astype(f32),
                  w3.astype(dot_dtype), b3.astype(f32))
    else:
        arrays = (w1.astype(dot_dtype), b1.astype(f32),
                  s_params["w2"].astype(dot_dtype),
                  s_params["b2"][:, None].astype(f32),
                  b_params["w2"].astype(dot_dtype),
                  b_params["b2"][:, None].astype(f32),
                  s_params["w3"].astype(dot_dtype),
                  s_params["b3"][:, None].astype(f32),
                  b_params["w3"].astype(dot_dtype),
                  b_params["b3"][:, None].astype(f32))

    maskT = jnp.asarray(mask, f32).reshape(D, 1)
    return {"data_dim": D, "hidden_dim": H, "block_diag": block_diag,
            "dot_dtype": jnp.dtype(dot_dtype), "maskT": maskT,
            "arrays": arrays}


# --------------------------- tiling / VMEM policy -----------------------------

def _vmem_capacity_bytes():
    try:
        return int(pltpu.get_tpu_info().vmem_capacity_bytes)
    except Exception:
        return 64 * 1024 * 1024      # conservative fallback (v7x per-TC VMEM)


def _pick_tile_b(b_pad, data_dim, hidden_dim, vmem_cap):
    # Per-lane footprint: double-buffered z/x/logdet streams + live f32
    # intermediates (h1, h2, s/b) inside the kernel body.
    bytes_per_lane = 4 * (4 * data_dim + 4 + 4 * hidden_dim + 2 * data_dim)
    budget = int(0.5 * vmem_cap)                          # leave compiler headroom
    cap = max(128, (budget // max(1, bytes_per_lane)) // 128 * 128)
    cap = min(cap, 8192)                                  # step overhead fully amortized
    if b_pad > 128:                                       # >= 2 tiles -> v7x megacore split
        cap = max(128, min(cap, (b_pad // 2) // 128 * 128))
    tb = min(cap, b_pad)
    while b_pad % tb != 0:                                # exact grid, no ragged tile
        tb -= 128
    return tb


# ------------------------------- forward --------------------------------------

def coupling_layer_forward_t(zT, fused, *, tile_b=None):
    """Forward with the batch on the lane axis.

    zT: (D, B_pad) float32 with B_pad a multiple of 128 (padded lanes are
    ignored by the caller).  Returns (xT, log_detT) with shapes (D, B_pad) and
    (1, B_pad) so a stack of coupling layers chains without any re-layouts.
    """
    D, b_pad = zT.shape
    if b_pad % 128 != 0:
        raise ValueError("batch axis of zT must be padded to a multiple of 128")
    if D != fused["data_dim"]:
        raise ValueError("data_dim mismatch between zT and fused params")
    H = fused["hidden_dim"]
    w_item = fused["dot_dtype"].itemsize
    vmem_cap = _vmem_capacity_bytes()

    tb = tile_b if tile_b is not None else _pick_tile_b(b_pad, D, H, vmem_cap)
    tb = max(128, min(_round_up(tb, 128), b_pad))
    while b_pad % tb != 0:
        tb -= 128
    grid = (b_pad // tb,)

    const = lambda i: (0, 0)
    stream_in = pl.BlockSpec((D, tb), lambda i: (0, i))
    if fused["block_diag"]:
        kernel = functools.partial(_coupling_kernel_blockdiag, data_dim=D)
        weight_specs = [
            pl.BlockSpec((2 * H, D), const), pl.BlockSpec((2 * H, 1), const),
            pl.BlockSpec((2 * H, 2 * H), const), pl.BlockSpec((2 * H, 1), const),
            pl.BlockSpec((2 * D, 2 * H), const), pl.BlockSpec((2 * D, 1), const),
        ]
        weight_bytes = ((2 * H * D + 4 * H * H + 4 * D * H) * w_item
                        + (4 * H + 2 * D) * 4)
        mm_flops = 2 * b_pad * (2 * H * D + 4 * H * H + 4 * D * H)
    else:
        kernel = functools.partial(_coupling_kernel_split, data_dim=D,
                                   hidden_dim=H)
        weight_specs = [
            pl.BlockSpec((2 * H, D), const), pl.BlockSpec((2 * H, 1), const),
            pl.BlockSpec((H, H), const), pl.BlockSpec((H, 1), const),
            pl.BlockSpec((H, H), const), pl.BlockSpec((H, 1), const),
            pl.BlockSpec((D, H), const), pl.BlockSpec((D, 1), const),
            pl.BlockSpec((D, H), const), pl.BlockSpec((D, 1), const),
        ]
        weight_bytes = ((2 * H * D + 2 * H * H + 2 * D * H) * w_item
                        + (4 * H + 2 * D) * 4)
        mm_flops = 2 * b_pad * (2 * H * D + 2 * H * H + 2 * D * H)

    # Generation-aware VMEM limit: derived tile footprint (with margin), capped
    # below physical VMEM so the compiler keeps headroom (64 MiB/TC on v7x,
    # 128 MiB on v5e/v6e).
    io_tile = (2 * D * tb + tb) * 4                       # z + x + logdet tiles (f32)
    acts = (4 * H * tb + 2 * D * tb) * 4                  # h1/h2 + s/b intermediates
    derived = 2 * io_tile + weight_bytes + acts + (2 << 20)
    vmem_limit = int(min(0.85 * vmem_cap, max(16 * 1024 * 1024, 2 * derived)))

    cost = pl.CostEstimate(
        flops=int(mm_flops + 8 * b_pad * D),
        transcendentals=int(b_pad * D),
        bytes_accessed=int((2 * D + 1) * b_pad * 4 + weight_bytes + D * 4))

    xT, ld = pl.pallas_call(
        kernel,
        grid=grid,
        in_specs=[stream_in, pl.BlockSpec((D, 1), const)] + weight_specs,
        out_specs=(pl.BlockSpec((D, tb), lambda i: (0, i)),     # x (lane-dense)
                   pl.BlockSpec((1, tb), lambda i: (0, i))),    # log_det
        out_shape=(jax.ShapeDtypeStruct((D, b_pad), jnp.float32),
                   jax.ShapeDtypeStruct((1, b_pad), jnp.float32)),
        compiler_params=pltpu.CompilerParams(
            dimension_semantics=("parallel",),          # megacore sharding on v7x
            vmem_limit_bytes=vmem_limit),
        cost_estimate=cost,
    )(zT, fused["maskT"], *fused["arrays"])
    return xT, ld


def coupling_layer_forward(z, fused, *, tile_b=None):
    """(B, D) -> ((B, D), (B,)) convenience wrapper: transposes exactly once."""
    B, D = z.shape
    b_pad = _round_up(B, 128)
    zT = jnp.pad(jnp.asarray(z, jnp.float32).T, ((0, 0), (0, b_pad - B)))
    xT, ld = coupling_layer_forward_t(zT, fused, tile_b=tile_b)
    return xT[:, :B].T, ld[0, :B]


# ------------------------------ test harness ----------------------------------

def _init_linear(key, in_dim, out_dim):
    kw, kb = jax.random.split(key)
    bound = 1.0 / jnp.sqrt(in_dim)
    w = jax.random.uniform(kw, (out_dim, in_dim), jnp.float32, -bound, bound)
    b = jax.random.uniform(kb, (out_dim,), jnp.float32, -bound, bound)
    return w, b


def _init_mlp(key, data_dim, hidden_dim):
    k1, k2, k3 = jax.random.split(key, 3)
    w1, b1 = _init_linear(k1, data_dim, hidden_dim)
    w2, b2 = _init_linear(k2, hidden_dim, hidden_dim)
    w3, b3 = _init_linear(k3, hidden_dim, data_dim)
    return {"w1": w1, "b1": b1, "w2": w2, "b2": b2, "w3": w3, "b3": b3}


def _reference_forward(z, mask, s_params, b_params):
    def mlp(p, x):
        h = jnp.maximum(x @ p["w1"].T + p["b1"], 0.0)
        h = jnp.maximum(h @ p["w2"].T + p["b2"], 0.0)
        return h @ p["w3"].T + p["b3"]

    z_a = z * mask
    s = mlp(s_params, z_a)
    b = mlp(b_params, z_a)
    x = z_a + (1.0 - mask) * (z * jnp.exp(s) + b)
    log_det = ((1.0 - mask) * s).sum(axis=1)
    return x, log_det


if __name__ == "__main__":
    # Tolerance covers the backend's default matmul precision (TPU may run f32
    # dots through bf16 MXU passes on both the kernel and the jnp reference).
    ATOL = RTOL = 2e-2

    data_dim, hidden_dim = 8, 32
    key = jax.random.PRNGKey(0)
    kz, ks1, kb1, ks2, kb2, kz2, ks3, kb3, kz3 = jax.random.split(key, 9)

    mask1 = (jnp.arange(data_dim) % 2).astype(jnp.float32)   # alternating RealNVP mask
    mask2 = 1.0 - mask1
    s1 = _init_mlp(ks1, data_dim, hidden_dim)
    b1p = _init_mlp(kb1, data_dim, hidden_dim)
    s2 = _init_mlp(ks2, data_dim, hidden_dim)
    b2p = _init_mlp(kb2, data_dim, hidden_dim)

    # Weight fusion hoisted: once per layer, reused across every forward call.
    fused1 = fuse_coupling_params(s1, b1p, mask1)
    fused2 = fuse_coupling_params(s2, b2p, mask2)

    # 1) Small batch through the (B, D) boundary wrapper (single transpose).
    z = jax.random.normal(kz, (8, data_dim), jnp.float32)
    x, ld = coupling_layer_forward(z, fused1)
    jax.block_until_ready((x, ld))
    x_ref, ld_ref = _reference_forward(z, mask1, s1, b1p)
    assert jnp.allclose(x, x_ref, atol=ATOL, rtol=RTOL)
    assert jnp.allclose(ld, ld_ref, atol=ATOL, rtol=RTOL)

    # 2) Two coupling layers chained in the persistent (D, B_pad) layout:
    #    no transposes/pads between layers; multi-tile grid (384 lanes -> 3x128).
    B2 = 300
    z2 = jax.random.normal(kz2, (B2, data_dim), jnp.float32)
    b_pad = _round_up(B2, 128)
    zT = jnp.pad(z2.T, ((0, 0), (0, b_pad - B2)))
    xT1, ldT1 = coupling_layer_forward_t(zT, fused1)
    xT2, ldT2 = coupling_layer_forward_t(xT1, fused2)
    jax.block_until_ready((xT2, ldT2))
    x2 = xT2[:, :B2].T
    ld_total = (ldT1 + ldT2)[0, :B2]
    x1_ref, ld1_ref = _reference_forward(z2, mask1, s1, b1p)
    x2_ref, ld2_ref = _reference_forward(x1_ref, mask2, s2, b2p)
    assert jnp.allclose(x2, x2_ref, atol=ATOL, rtol=RTOL)
    assert jnp.allclose(ld_total, ld1_ref + ld2_ref, atol=ATOL, rtol=RTOL)

    # 3) Larger hidden dim: block-diag fusion auto-disabled -> split per-group
    #    matmuls (avoids doubling MXU MACs once 2H reaches the MXU width).
    hidden_big = 64
    s3 = _init_mlp(ks3, data_dim, hidden_big)
    b3p = _init_mlp(kb3, data_dim, hidden_big)
    fused3 = fuse_coupling_params(s3, b3p, mask1)
    assert not fused3["block_diag"]
    z3 = jax.random.normal(kz3, (16, data_dim), jnp.float32)
    x3, ld3 = coupling_layer_forward(z3, fused3)
    jax.block_until_ready((x3, ld3))
    x3_ref, ld3_ref = _reference_forward(z3, mask1, s3, b3p)
    assert jnp.allclose(x3, x3_ref, atol=ATOL, rtol=RTOL)
    assert jnp.allclose(ld3, ld3_ref, atol=ATOL, rtol=RTOL)

    # TODO(synk): the inverse() pass of CouplingLayer is not implemented here
    # (only forward was requested); it would be a near-identical kernel.
    print("KERNEL_OK")
</pallas_src>

<mosaic_0001>
module attributes {stable_mosaic.version = 11 : i64} {
  func.func @_coupling_kernel_blockdiag(%arg0: i32, %arg1: memref<8x128xf32, #tpu.memory_space<vmem>>, %arg2: memref<8x1xf32, #tpu.memory_space<vmem>>, %arg3: memref<64x8xf32, #tpu.memory_space<vmem>>, %arg4: memref<64x1xf32, #tpu.memory_space<vmem>>, %arg5: memref<64x64xf32, #tpu.memory_space<vmem>>, %arg6: memref<64x1xf32, #tpu.memory_space<vmem>>, %arg7: memref<16x64xf32, #tpu.memory_space<vmem>>, %arg8: memref<16x1xf32, #tpu.memory_space<vmem>>, %arg9: memref<8x128xf32, #tpu.memory_space<vmem>>, %arg10: memref<1x128xf32, #tpu.memory_space<vmem>>) attributes {dimension_semantics = [#tpu.dimension_semantics<parallel>], iteration_bounds = array<i64: 1>, scalar_prefetch = 0 : i64, scratch_operands = 0 : i64, tpu.core_type = #tpu.core_type<tc>, window_params = [{transform_indices = @transform_0, window_bounds = array<i64: 8, 128>}, {pipeline_mode = #tpu.pipeline_mode<synchronous>, transform_indices = @transform_1, window_bounds = array<i64: 8, 1>}, {pipeline_mode = #tpu.pipeline_mode<synchronous>, transform_indices = @transform_2, window_bounds = array<i64: 64, 8>}, {pipeline_mode = #tpu.pipeline_mode<synchronous>, transform_indices = @transform_3, window_bounds = array<i64: 64, 1>}, {pipeline_mode = #tpu.pipeline_mode<synchronous>, transform_indices = @transform_4, window_bounds = array<i64: 64, 64>}, {pipeline_mode = #tpu.pipeline_mode<synchronous>, transform_indices = @transform_5, window_bounds = array<i64: 64, 1>}, {pipeline_mode = #tpu.pipeline_mode<synchronous>, transform_indices = @transform_6, window_bounds = array<i64: 16, 64>}, {pipeline_mode = #tpu.pipeline_mode<synchronous>, transform_indices = @transform_7, window_bounds = array<i64: 16, 1>}, {transform_indices = @transform_8, window_bounds = array<i64: 8, 128>}, {transform_indices = @transform_9, window_bounds = array<i64: 1, 128>}]} {
    %c0 = arith.constant 0 : index
    %c0_0 = arith.constant 0 : index
    %0 = vector.load %arg1[%c0, %c0_0] : memref<8x128xf32, #tpu.memory_space<vmem>>, vector<8x128xf32>
    %c0_1 = arith.constant 0 : index
    %c0_2 = arith.constant 0 : index
    %1 = vector.load %arg2[%c0_1, %c0_2] : memref<8x1xf32, #tpu.memory_space<vmem>>, vector<8x1xf32>
    %cst = arith.constant 1.000000e+00 : f32
    %2 = vector.broadcast %cst : f32 to vector<8x1xf32>
    %3 = arith.subf %2, %1 : vector<8x1xf32>
    %4 = vector.broadcast %1 : vector<8x1xf32> to vector<8x128xf32>
    %5 = arith.mulf %0, %4 : vector<8x128xf32>
    %c0_3 = arith.constant 0 : index
    %c0_4 = arith.constant 0 : index
    %6 = vector.load %arg3[%c0_3, %c0_4] : memref<64x8xf32, #tpu.memory_space<vmem>>, vector<64x8xf32>
    %cst_5 = arith.constant dense<0.000000e+00> : vector<64x128xf32>
    %7 = tpu.matmul %6, %5, %cst_5 {dimension_numbers = #tpu.dot_dimension_numbers<[1], [0], [0], [1], [0, 0, 1, 1], [], []>} : vector<64x8xf32>, vector<8x128xf32>, vector<64x128xf32> -> vector<64x128xf32>
    %c0_6 = arith.constant 0 : index
    %c0_7 = arith.constant 0 : index
    %8 = vector.load %arg4[%c0_6, %c0_7] : memref<64x1xf32, #tpu.memory_space<vmem>>, vector<64x1xf32>
    %9 = vector.broadcast %8 : vector<64x1xf32> to vector<64x128xf32>
    %10 = arith.addf %7, %9 : vector<64x128xf32>
    %cst_8 = arith.constant 0.000000e+00 : f32
    %11 = vector.broadcast %cst_8 : f32 to vector<64x128xf32>
    %12 = arith.maximumf %10, %11 : vector<64x128xf32>
    %c0_9 = arith.constant 0 : index
    %c0_10 = arith.constant 0 : index
    %13 = vector.load %arg5[%c0_9, %c0_10] : memref<64x64xf32, #tpu.memory_space<vmem>>, vector<64x64xf32>
    %cst_11 = arith.constant dense<0.000000e+00> : vector<64x128xf32>
    %14 = tpu.matmul %13, %12, %cst_11 {dimension_numbers = #tpu.dot_dimension_numbers<[1], [0], [0], [1], [0, 0, 1, 1], [], []>} : vector<64x64xf32>, vector<64x128xf32>, vector<64x128xf32> -> vector<64x128xf32>
    %c0_12 = arith.constant 0 : index
    %c0_13 = arith.constant 0 : index
    %15 = vector.load %arg6[%c0_12, %c0_13] : memref<64x1xf32, #tpu.memory_space<vmem>>, vector<64x1xf32>
    %16 = vector.broadcast %15 : vector<64x1xf32> to vector<64x128xf32>
    %17 = arith.addf %14, %16 : vector<64x128xf32>
    %cst_14 = arith.constant 0.000000e+00 : f32
    %18 = vector.broadcast %cst_14 : f32 to vector<64x128xf32>
    %19 = arith.maximumf %17, %18 : vector<64x128xf32>
    %c0_15 = arith.constant 0 : index
    %c0_16 = arith.constant 0 : index
    %20 = vector.load %arg7[%c0_15, %c0_16] : memref<16x64xf32, #tpu.memory_space<vmem>>, vector<16x64xf32>
    %cst_17 = arith.constant dense<0.000000e+00> : vector<16x128xf32>
    %21 = tpu.matmul %20, %19, %cst_17 {dimension_numbers = #tpu.dot_dimension_numbers<[1], [0], [0], [1], [0, 0, 1, 1], [], []>} : vector<16x64xf32>, vector<64x128xf32>, vector<16x128xf32> -> vector<16x128xf32>
    %c0_18 = arith.constant 0 : index
    %c0_19 = arith.constant 0 : index
    %22 = vector.load %arg8[%c0_18, %c0_19] : memref<16x1xf32, #tpu.memory_space<vmem>>, vector<16x1xf32>
    %23 = vector.broadcast %22 : vector<16x1xf32> to vector<16x128xf32>
    %24 = arith.addf %21, %23 : vector<16x128xf32>
    %25 = vector.extract_strided_slice %24 {offsets = [0, 0], sizes = [8, 128], strides = [1, 1]} : vector<16x128xf32> to vector<8x128xf32>
    %26 = vector.extract_strided_slice %24 {offsets = [8, 0], sizes = [8, 128], strides = [1, 1]} : vector<16x128xf32> to vector<8x128xf32>
    %27 = math.exp %25 : vector<8x128xf32>
    %28 = arith.mulf %0, %27 : vector<8x128xf32>
    %29 = arith.addf %28, %26 : vector<8x128xf32>
    %30 = vector.broadcast %3 : vector<8x1xf32> to vector<8x128xf32>
    %31 = arith.mulf %30, %29 : vector<8x128xf32>
    %32 = arith.addf %5, %31 : vector<8x128xf32>
    %c0_20 = arith.constant 0 : index
    %c0_21 = arith.constant 0 : index
    %33 = vector.load %arg9[%c0_20, %c0_21] : memref<8x128xf32, #tpu.memory_space<vmem>>, vector<8x128xf32>
    tpu.vector_store %arg9[%c0_20, %c0_21], %32 {strides = array<i32>} : memref<8x128xf32, #tpu.memory_space<vmem>>, vector<8x128xf32>,
    %34 = vector.broadcast %3 : vector<8x1xf32> to vector<8x128xf32>
    %35 = arith.mulf %34, %25 : vector<8x128xf32>
    %cst_22 = arith.constant dense<0.000000e+00> : vector<128xf32>
    %36 = vector.multi_reduction <add>, %35, %cst_22 [0] : vector<8x128xf32> to vector<128xf32>
    %37 = vector.shape_cast %36 : vector<128xf32> to vector<1x128xf32>
    %c0_23 = arith.constant 0 : index
    %c0_24 = arith.constant 0 : index
    %38 = vector.load %arg10[%c0_23, %c0_24] : memref<1x128xf32, #tpu.memory_space<vmem>>, vector<1x128xf32>
    tpu.vector_store %arg10[%c0_23, %c0_24], %37 {strides = array<i32>} : memref<1x128xf32, #tpu.memory_space<vmem>>, vector<1x128xf32>,
    return
  }
  func.func @transform_0(%arg0: i32) -> (i32, i32) {
    %c0_i32 = arith.constant 0 : i32
    %c0_i32_0 = arith.constant 0 : i32
    return %c0_i32, %arg0 : i32, i32
  }
  func.func @transform_1(%arg0: i32) -> (i32, i32) {
    %c0_i32 = arith.constant 0 : i32
    %c0_i32_0 = arith.constant 0 : i32
    %c0_i32_1 = arith.constant 0 : i32
    return %c0_i32, %c0_i32_0 : i32, i32
  }
  func.func @transform_2(%arg0: i32) -> (i32, i32) {
    %c0_i32 = arith.constant 0 : i32
    %c0_i32_0 = arith.constant 0 : i32
    %c0_i32_1 = arith.constant 0 : i32
    return %c0_i32, %c0_i32_0 : i32, i32
  }
  func.func @transform_3(%arg0: i32) -> (i32, i32) {
    %c0_i32 = arith.constant 0 : i32
    %c0_i32_0 = arith.constant 0 : i32
    %c0_i32_1 = arith.constant 0 : i32
    return %c0_i32, %c0_i32_0 : i32, i32
  }
  func.func @transform_4(%arg0: i32) -> (i32, i32) {
    %c0_i32 = arith.constant 0 : i32
    %c0_i32_0 = arith.constant 0 : i32
    %c0_i32_1 = arith.constant 0 : i32
    return %c0_i32, %c0_i32_0 : i32, i32
  }
  func.func @transform_5(%arg0: i32) -> (i32, i32) {
    %c0_i32 = arith.constant 0 : i32
    %c0_i32_0 = arith.constant 0 : i32
    %c0_i32_1 = arith.constant 0 : i32
    return %c0_i32, %c0_i32_0 : i32, i32
  }
  func.func @transform_6(%arg0: i32) -> (i32, i32) {
    %c0_i32 = arith.constant 0 : i32
    %c0_i32_0 = arith.constant 0 : i32
    %c0_i32_1 = arith.constant 0 : i32
    return %c0_i32, %c0_i32_0 : i32, i32
  }
  func.func @transform_7(%arg0: i32) -> (i32, i32) {
    %c0_i32 = arith.constant 0 : i32
    %c0_i32_0 = arith.constant 0 : i32
    %c0_i32_1 = arith.constant 0 : i32
    return %c0_i32, %c0_i32_0 : i32, i32
  }
  func.func @transform_8(%arg0: i32) -> (i32, i32) {
    %c0_i32 = arith.constant 0 : i32
    %c0_i32_0 = arith.constant 0 : i32
    return %c0_i32, %arg0 : i32, i32
  }
  func.func @transform_9(%arg0: i32) -> (i32, i32) {
    %c0_i32 = arith.constant 0 : i32
    %c0_i32_0 = arith.constant 0 : i32
    return %c0_i32, %arg0 : i32, i32
  }
}

</mosaic_0001>

<llo_original>
// kernel: tpu_custom_call.1
$region0: #{tpu_custom_call.1}
  #allocation0 [shape = 'u32[]', space=smem, size = 0x4, offset = 0x4, fixed_abs, tag = 'smem constant byte address 0x4 - core index']
  #allocation1 [shape = 'u32[144,128]{1,0:T(1,128)}', space=vmem, size = 0x12000, scoped, tag = 'internal scratch']
  %s0 = inlined_call_operand.vmem [shape: f32[8,128], index: 0, kind: input, shape index: {}]
  %s1 = inlined_call_operand.vmem [shape: f32[8,1], index: 1, kind: input, shape index: {}]
  %s2 = inlined_call_operand.vmem [shape: f32[64,8], index: 2, kind: input, shape index: {}]
  %s3 = inlined_call_operand.vmem [shape: f32[64,1], index: 3, kind: input, shape index: {}]
  %s4 = inlined_call_operand.vmem [shape: f32[64,64], index: 4, kind: input, shape index: {}]
  %s5 = inlined_call_operand.vmem [shape: f32[64,1], index: 5, kind: input, shape index: {}]
  %s6 = inlined_call_operand.vmem [shape: f32[16,64], index: 6, kind: input, shape index: {}]
  %s7 = inlined_call_operand.vmem [shape: f32[16,1], index: 7, kind: input, shape index: {}]
  %s8 = inlined_call_operand.hbm [shape: f32[8,128], index: 8, kind: output, shape index: {0}]
  %s9 = inlined_call_operand.hbm [shape: f32[1,128], index: 9, kind: output, shape index: {1}]
  %10 = xla_tuple %s8, %s9
  %s11 = sld [smem:[#allocation0]]
  $region50: #{tpu_custom_call.1} parent=0
    _
  %s13 = ssub.s32 1, %s11
  %s14 = scalar_select 0, %s13, %s11
  $region1: #{tpu_custom_call.1} parent=0
    #allocation2 [shape = 'u8[4096]{0}', space=vmem, size = 0x1000, scoped, tag = 'output window, operand 0, single buffered']
    #allocation3 [shape = 's32[1]{0}', space=sflag, size = 0x4, scoped, tag = 'scoped memory for tpu_custom_call.1']
    #allocation4 [shape = 'u8[512]{0}', space=vmem, size = 0x400, scoped, tag = 'output window, operand 1, single buffered']
    #allocation5 [shape = 's32[1]{0}', space=sflag, size = 0x4, scoped, tag = 'scoped memory for tpu_custom_call.1']
    %15 = vsyncpa [#allocation3], 0
    %16 = vsyncpa [#allocation5], 0
    // Predicated region
    $region2: #{tpu_custom_call.1} parent=1 // pred_check
      _
    $region3: #{tpu_custom_call.1} parent=1 // pred_check_branch
      %18 = sbr.rel (0) target = $region5
    $region4: #{tpu_custom_call.1} parent=1 // pred_region
      _
    $region5: #{tpu_custom_call.1} parent=1 // pred_fallthru
      _
    // Predicated region
    $region6: #{tpu_custom_call.1} parent=1 // pred_check
      _
    $region7: #{tpu_custom_call.1} parent=1 // pred_check_branch
      %20 = sbr.rel (0) target = $region9
    $region8: #{tpu_custom_call.1} parent=1 // pred_region
      _
    $region9: #{tpu_custom_call.1} parent=1 // pred_fallthru
      _
    // Predicated region
    $region10: #{tpu_custom_call.1} parent=1 // pred_check
      _
    $region11: #{tpu_custom_call.1} parent=1 // pred_check_branch
      %22 = sbr.rel (0) target = $region13
    $region12: #{tpu_custom_call.1} parent=1 // pred_region
      _
    $region13: #{tpu_custom_call.1} parent=1 // pred_fallthru
      _
    // Predicated region
    $region14: #{tpu_custom_call.1} parent=1 // pred_check
      _
    $region15: #{tpu_custom_call.1} parent=1 // pred_check_branch
      %24 = sbr.rel (0) target = $region17
    $region16: #{tpu_custom_call.1} parent=1 // pred_region
      _
    $region17: #{tpu_custom_call.1} parent=1 // pred_fallthru
      _
    // Predicated region
    $region18: #{tpu_custom_call.1} parent=1 // pred_check
      _
    $region19: #{tpu_custom_call.1} parent=1 // pred_check_branch
      %26 = sbr.rel (0) target = $region21
    $region20: #{tpu_custom_call.1} parent=1 // pred_region
      _
    $region21: #{tpu_custom_call.1} parent=1 // pred_fallthru
      _
    // Predicated region
    $region22: #{tpu_custom_call.1} parent=1 // pred_check
      _
    $region23: #{tpu_custom_call.1} parent=1 // pred_check_branch
      %28 = sbr.rel (0) target = $region25
    $region24: #{tpu_custom_call.1} parent=1 // pred_region
      _
    $region25: #{tpu_custom_call.1} parent=1 // pred_fallthru
      _
    // Predicated region
    $region26: #{tpu_custom_call.1} parent=1 // pred_check
      _
    $region27: #{tpu_custom_call.1} parent=1 // pred_check_branch
      %30 = sbr.rel (0) target = $region29
    $region28: #{tpu_custom_call.1} parent=1 // pred_region
      _
    $region29: #{tpu_custom_call.1} parent=1 // pred_fallthru
      _
    // Predicated region
    $region30: #{tpu_custom_call.1} parent=1 // pred_check
      _
    $region31: #{tpu_custom_call.1} parent=1 // pred_check_branch
      %32 = sbr.rel (0) target = $region33
    $region32: #{tpu_custom_call.1} parent=1 // pred_region
      _
    $region33: #{tpu_custom_call.1} parent=1 // pred_fallthru
      _
    %v33 = vld [vmem:[%s0] sm:$0xff]
    %v34 = vld [vmem:[%s1] sm:$0xff]
    %v35 = vsub.f32 1.0, %v34
    %37 = vset.pattern.permute.xlu0 0
    %38 = vperm.xlu0 %37, %v34
    %v39 = vpop.permute.xlu0 %38
    %v41 = vmul.f32 %v33, %v39
    %v42 = vld [vmem:[%s2] sm:$0xff]
    %v43 = vld [vmem:[%s2 + $0x8] sm:$0xff]
    %v44 = vld [vmem:[%s2 + $0x10] sm:$0xff]
    %v45 = vld [vmem:[%s2 + $0x18] sm:$0xff]
    %v46 = vld [vmem:[%s2 + $0x20] sm:$0xff]
    %v47 = vld [vmem:[%s2 + $0x28] sm:$0xff]
    %v48 = vld [vmem:[%s2 + $0x30] sm:$0xff]
    %v49 = vld [vmem:[%s2 + $0x38] sm:$0xff]
    %v50 = vld [vmem:[%s3] sm:$0xff]
    %v51 = vld [vmem:[%s3 + $0x8] sm:$0xff]
    %v52 = vld [vmem:[%s3 + $0x10] sm:$0xff]
    %v53 = vld [vmem:[%s3 + $0x18] sm:$0xff]
    %v54 = vld [vmem:[%s3 + $0x20] sm:$0xff]
    %v55 = vld [vmem:[%s3 + $0x28] sm:$0xff]
    %v56 = vld [vmem:[%s3 + $0x30] sm:$0xff]
    %v57 = vld [vmem:[%s3 + $0x38] sm:$0xff]
    %59 = vset.pattern.permute.xlu0 0
    %60 = vperm.xlu0 %59, %v50
    %v61 = vpop.permute.xlu0 %60
    %64 = vset.pattern.permute.xlu0 0
    %65 = vperm.xlu0 %64, %v51
    %v66 = vpop.permute.xlu0 %65
    %69 = vset.pattern.permute.xlu0 0
    %70 = vperm.xlu0 %69, %v52
    %v71 = vpop.permute.xlu0 %70
    %74 = vset.pattern.permute.xlu0 0
    %75 = vperm.xlu0 %74, %v53
    %v76 = vpop.permute.xlu0 %75
    %79 = vset.pattern.permute.xlu0 0
    %80 = vperm.xlu0 %79, %v54
    %v81 = vpop.permute.xlu0 %80
    %84 = vset.pattern.permute.xlu0 0
    %85 = vperm.xlu0 %84, %v55
    %v86 = vpop.permute.xlu0 %85
    %89 = vset.pattern.permute.xlu0 0
    %90 = vperm.xlu0 %89, %v56
    %v91 = vpop.permute.xlu0 %90
    %94 = vset.pattern.permute.xlu0 0
    %95 = vperm.xlu0 %94, %v57
    %v96 = vpop.permute.xlu0 %95
    %vm98 = vcmask 64512
    %v100 = vsel %vm98, %v42, 0
    %v103 = vsel %vm98, %v43, 0
    %v106 = vsel %vm98, %v44, 0
    %v109 = vsel %vm98, %v45, 0
    %v112 = vsel %vm98, %v46, 0
    %v115 = vsel %vm98, %v47, 0
    %v118 = vsel %vm98, %v48, 0
    %v121 = vsel %vm98, %v49, 0
    %123 = vmatprep.subr.mxu0 0.0
    %124 = vmatpush1.msra.mxu0 %v41
    %125 = vmatprep.subr.mxu0 0.0
    %126 = vmatpush1.msra.mxu0 0.0
    %127 = vmatprep.subr.mxu0 0.0
    %128 = vmatpush1.msra.mxu0 0.0
    %129 = vmatprep.subr.mxu0 0.0
    %130 = vmatpush1.msra.mxu0 0.0
    %131 = vmatprep.subr.mxu0 0.0
    %132 = vmatpush1.msra.mxu0 0.0
    %133 = vmatprep.subr.mxu0 0.0
    %134 = vmatpush1.msra.mxu0 0.0
    %135 = vmatprep.subr.mxu0 0.0
    %136 = vmatpush1.msra.mxu0 0.0
    %137 = vmatprep.subr.mxu0 0.0
    %138 = vmatpush1.msra.mxu0 0.0
    %139 = vmatprep.subr.mxu0 0.0
    %140 = vmatpush1.msra.mxu0 0.0
    %141 = vmatprep.subr.mxu0 0.0
    %142 = vmatpush1.msra.mxu0 0.0
    %143 = vmatprep.subr.mxu0 0.0
    %144 = vmatpush1.msra.mxu0 0.0
    %145 = vmatprep.subr.mxu0 0.0
    %146 = vmatpush1.msra.mxu0 0.0
    %147 = vmatprep.subr.mxu0 0.0
    %148 = vmatpush1.msra.mxu0 0.0
    %149 = vmatprep.subr.mxu0 0.0
    %150 = vmatpush1.msra.mxu0 0.0
    %151 = vmatprep.subr.mxu0 0.0
    %152 = vmatpush1.msra.mxu0 0.0
    %153 = vmatprep.subr.mxu0 0.0
    %154 = vmatpush1.msra.mxu0 0.0
    %155 = vmatprep.subr.mxu0 0.0
    %156 = vmatpush1.msra.mxu0 0.0
    %157 = vmatprep.subr.mxu0 0.0
    %158 = vmatpush1.msra.mxu0 0.0
    %159 = vmatprep.subr.mxu0 0.0
    %160 = vmatpush1.msra.mxu0 0.0
    %161 = vmatprep.subr.mxu0 0.0
    %162 = vmatpush1.msra.mxu0 0.0
    %163 = vmatprep.subr.mxu0 0.0
    %164 = vmatpush1.msra.mxu0 0.0
    %165 = vmatprep.subr.mxu0 0.0
    %166 = vmatpush1.msra.mxu0 0.0
    %167 = vmatprep.subr.mxu0 0.0
    %168 = vmatpush1.msra.mxu0 0.0
    %169 = vmatprep.subr.mxu0 0.0
    %170 = vmatpush1.msra.mxu0 0.0
    %171 = vmatprep.subr.mxu0 0.0
    %172 = vmatpush1.msra.mxu0 0.0
    %173 = vmatprep.subr.mxu0 0.0
    %174 = vmatpush1.msra.mxu0 0.0
    %175 = vmatprep.subr.mxu0 0.0
    %176 = vmatpush1.msra.mxu0 0.0
    %177 = vmatprep.subr.mxu0 0.0
    %178 = vmatpush1.msra.mxu0 0.0
    %179 = vmatprep.subr.mxu0 0.0
    %180 = vmatpush1.msra.mxu0 0.0
    %181 = vmatprep.subr.mxu0 0.0
    %182 = vmatpush1.msra.mxu0 0.0
    %183 = vmatprep.subr.mxu0 0.0
    %184 = vmatpush1.msra.mxu0 0.0
    %185 = vmatprep.subr.mxu0 0.0
    %186 = vmatpush1.msra.mxu0 0.0
    %187 = vmatprep.mubr.f32.mxu0 0.0
    %188 = vmatmul.mubr.f32.gmra.mrb[0].mxu0 %v100
    %v189 = vpop.f32.mrb[0].mxu0
    %v190 = vadd.f32 %v61, %v189
    %v191 = vpop.f32.mrb[0].mxu0
    %192 = vmatprep.mubr.f32.mxu0 0.0
    %193 = vmatmul.mubr.f32.gmra.mrb[0].mxu0 %v103
    %v194 = vpop.f32.mrb[0].mxu0
    %v195 = vadd.f32 %v66, %v194
    %v196 = vpop.f32.mrb[0].mxu0
    %197 = vmatprep.mubr.f32.mxu0 0.0
    %198 = vmatmul.mubr.f32.gmra.mrb[0].mxu0 %v106
    %v199 = vpop.f32.mrb[0].mxu0
    %v200 = vadd.f32 %v71, %v199
    %v201 = vpop.f32.mrb[0].mxu0
    %202 = vmatprep.mubr.f32.mxu0 0.0
    %203 = vmatmul.mubr.f32.gmra.mrb[0].mxu0 %v109
    %v204 = vpop.f32.mrb[0].mxu0
    %v205 = vadd.f32 %v76, %v204
    %v206 = vpop.f32.mrb[0].mxu0
    %207 = vmatprep.mubr.f32.mxu0 0.0
    %208 = vmatmul.mubr.f32.gmra.mrb[0].mxu0 %v112
    %v209 = vpop.f32.mrb[0].mxu0
    %v210 = vadd.f32 %v81, %v209
    %v211 = vpop.f32.mrb[0].mxu0
    %212 = vmatprep.mubr.f32.mxu0 0.0
    %213 = vmatmul.mubr.f32.gmra.mrb[0].mxu0 %v115
    %v214 = vpop.f32.mrb[0].mxu0
    %v215 = vadd.f32 %v86, %v214
    %v216 = vpop.f32.mrb[0].mxu0
    %217 = vmatprep.mubr.f32.mxu0 0.0
    %218 = vmatmul.mubr.f32.gmra.mrb[0].mxu0 %v118
    %v219 = vpop.f32.mrb[0].mxu0
    %v220 = vadd.f32 %v91, %v219
    %v221 = vpop.f32.mrb[0].mxu0
    %222 = vmatprep.mubr.f32.mxu0 0.0
    %223 = vmatmul.mubr.f32.gmra.mrb[0].mxu0 %v121
    %v224 = vpop.f32.mrb[0].mxu0
    %v225 = vadd.f32 %v96, %v224
    %v226 = vpop.f32.mrb[0].mxu0
    %227 = vdwg.mxu0
    %v228 = vmax.f32 %v190, 0.0
    %v229 = vmax.f32 %v195, 0.0
    %v230 = vmax.f32 %v200, 0.0
    %v231 = vmax.f32 %v205, 0.0
    %v232 = vmax.f32 %v210, 0.0
    %v233 = vmax.f32 %v215, 0.0
    %v234 = vmax.f32 %v220, 0.0
    %v235 = vmax.f32 %v225, 0.0
    %v236 = vld [vmem:[%s4] sm:$0xff]
    %v237 = vld [vmem:[%s4 + $0x8] sm:$0xff]
    %v238 = vld [vmem:[%s4 + $0x10] sm:$0xff]
    %v239 = vld [vmem:[%s4 + $0x18] sm:$0xff]
    %v240 = vld [vmem:[%s4 + $0x20] sm:$0xff]
    %v241 = vld [vmem:[%s4 + $0x28] sm:$0xff]
    %v242 = vld [vmem:[%s4 + $0x30] sm:$0xff]
    %v243 = vld [vmem:[%s4 + $0x38] sm:$0xff]
    %v244 = vld [vmem:[%s5] sm:$0xff]
    %v245 = vld [vmem:[%s5 + $0x8] sm:$0xff]
    %v246 = vld [vmem:[%s5 + $0x10] sm:$0xff]
    %v247 = vld [vmem:[%s5 + $0x18] sm:$0xff]
    %v248 = vld [vmem:[%s5 + $0x20] sm:$0xff]
    %v249 = vld [vmem:[%s5 + $0x28] sm:$0xff]
    %v250 = vld [vmem:[%s5 + $0x30] sm:$0xff]
    %v251 = vld [vmem:[%s5 + $0x38] sm:$0xff]
    %253 = vset.pattern.permute.xlu0 0
    %254 = vperm.xlu0 %253, %v244
    %v255 = vpop.permute.xlu0 %254
    %258 = vset.pattern.permute.xlu0 0
    %259 = vperm.xlu0 %258, %v245
    %v260 = vpop.permute.xlu0 %259
    %263 = vset.pattern.permute.xlu0 0
    %264 = vperm.xlu0 %263, %v246
    %v265 = vpop.permute.xlu0 %264
    %268 = vset.pattern.permute.xlu0 0
    %269 = vperm.xlu0 %268, %v247
    %v270 = vpop.permute.xlu0 %269
    %273 = vset.pattern.permute.xlu0 0
    %274 = vperm.xlu0 %273, %v248
    %v275 = vpop.permute.xlu0 %274
    %278 = vset.pattern.permute.xlu0 0
    %279 = vperm.xlu0 %278, %v249
    %v280 = vpop.permute.xlu0 %279
    %283 = vset.pattern.permute.xlu0 0
    %284 = vperm.xlu0 %283, %v250
    %v285 = vpop.permute.xlu0 %284
    %288 = vset.pattern.permute.xlu0 0
    %289 = vperm.xlu0 %288, %v251
    %v290 = vpop.permute.xlu0 %289
    %vm292 = vcmask 523264
    %v294 = vsel %vm292, %v236, 0
    %v297 = vsel %vm292, %v237, 0
    %v300 = vsel %vm292, %v238, 0
    %v303 = vsel %vm292, %v239, 0
    %v306 = vsel %vm292, %v240, 0
    %v309 = vsel %vm292, %v241, 0
    %v312 = vsel %vm292, %v242, 0
    %v315 = vsel %vm292, %v243, 0
    %317 = vmatprep.subr.mxu0 0.0
    %318 = vmatpush1.msra.mxu0 %v228
    %319 = vmatprep.subr.mxu0 0.0
    %320 = vmatpush1.msra.mxu0 %v229
    %321 = vmatprep.subr.mxu0 0.0
    %322 = vmatpush1.msra.mxu0 %v230
    %323 = vmatprep.subr.mxu0 0.0
    %324 = vmatpush1.msra.mxu0 %v231
    %325 = vmatprep.subr.mxu0 0.0
    %326 = vmatpush1.msra.mxu0 %v232
    %327 = vmatprep.subr.mxu0 0.0
    %328 = vmatpush1.msra.mxu0 %v233
    %329 = vmatprep.subr.mxu0 0.0
    %330 = vmatpush1.msra.mxu0 %v234
    %331 = vmatprep.subr.mxu0 0.0
    %332 = vmatpush1.msra.mxu0 %v235
    %333 = vmatprep.subr.mxu0 0.0
    %334 = vmatpush1.msra.mxu0 0.0
    %335 = vmatprep.subr.mxu0 0.0
    %336 = vmatpush1.msra.mxu0 0.0
    %337 = vmatprep.subr.mxu0 0.0
    %338 = vmatpush1.msra.mxu0 0.0
    %339 = vmatprep.subr.mxu0 0.0
    %340 = vmatpush1.msra.mxu0 0.0
    %341 = vmatprep.subr.mxu0 0.0
    %342 = vmatpush1.msra.mxu0 0.0
    %343 = vmatprep.subr.mxu0 0.0
    %344 = vmatpush1.msra.mxu0 0.0
    %345 = vmatprep.subr.mxu0 0.0
    %346 = vmatpush1.msra.mxu0 0.0
    %347 = vmatprep.subr.mxu0 0.0
    %348 = vmatpush1.msra.mxu0 0.0
    %349 = vmatprep.subr.mxu0 0.0
    %350 = vmatpush1.msra.mxu0 0.0
    %351 = vmatprep.subr.mxu0 0.0
    %352 = vmatpush1.msra.mxu0 0.0
    %353 = vmatprep.subr.mxu0 0.0
    %354 = vmatpush1.msra.mxu0 0.0
    %355 = vmatprep.subr.mxu0 0.0
    %356 = vmatpush1.msra.mxu0 0.0
    %357 = vmatprep.subr.mxu0 0.0
    %358 = vmatpush1.msra.mxu0 0.0
    %359 = vmatprep.subr.mxu0 0.0
    %360 = vmatpush1.msra.mxu0 0.0
    %361 = vmatprep.subr.mxu0 0.0
    %362 = vmatpush1.msra.mxu0 0.0
    %363 = vmatprep.subr.mxu0 0.0
    %364 = vmatpush1.msra.mxu0 0.0
    %365 = vmatprep.subr.mxu0 0.0
    %366 = vmatpush1.msra.mxu0 0.0
    %367 = vmatprep.subr.mxu0 0.0
    %368 = vmatpush1.msra.mxu0 0.0
    %369 = vmatprep.subr.mxu0 0.0
    %370 = vmatpush1.msra.mxu0 0.0
    %371 = vmatprep.subr.mxu0 0.0
    %372 = vmatpush1.msra.mxu0 0.0
    %373 = vmatprep.subr.mxu0 0.0
    %374 = vmatpush1.msra.mxu0 0.0
    %375 = vmatprep.subr.mxu0 0.0
    %376 = vmatpush1.msra.mxu0 0.0
    %377 = vmatprep.subr.mxu0 0.0
    %378 = vmatpush1.msra.mxu0 0.0
    %379 = vmatprep.subr.mxu0 0.0
    %380 = vmatpush1.msra.mxu0 0.0
    %381 = vmatprep.mubr.f32.mxu0 0.0
    %382 = vmatmul.mubr.f32.gmra.mrb[0].mxu0 %v294
    %v383 = vpop.f32.mrb[0].mxu0
    %v384 = vadd.f32 %v255, %v383
    %v385 = vpop.f32.mrb[0].mxu0
    %386 = vmatprep.mubr.f32.mxu0 0.0
    %387 = vmatmul.mubr.f32.gmra.mrb[0].mxu0 %v297
    %v388 = vpop.f32.mrb[0].mxu0
    %v389 = vadd.f32 %v260, %v388
    %v390 = vpop.f32.mrb[0].mxu0
    %391 = vmatprep.mubr.f32.mxu0 0.0
    %392 = vmatmul.mubr.f32.gmra.mrb[0].mxu0 %v300
    %v393 = vpop.f32.mrb[0].mxu0
    %v394 = vadd.f32 %v265, %v393
    %v395 = vpop.f32.mrb[0].mxu0
    %396 = vmatprep.mubr.f32.mxu0 0.0
    %397 = vmatmul.mubr.f32.gmra.mrb[0].mxu0 %v303
    %v398 = vpop.f32.mrb[0].mxu0
    %v399 = vadd.f32 %v270, %v398
    %v400 = vpop.f32.mrb[0].mxu0
    %401 = vmatprep.mubr.f32.mxu0 0.0
    %402 = vmatmul.mubr.f32.gmra.mrb[0].mxu0 %v306
    %v403 = vpop.f32.mrb[0].mxu0
    %v404 = vadd.f32 %v275, %v403
    %v405 = vpop.f32.mrb[0].mxu0
    %406 = vmatprep.mubr.f32.mxu0 0.0
    %407 = vmatmul.mubr.f32.gmra.mrb[0].mxu0 %v309
    %v408 = vpop.f32.mrb[0].mxu0
    %v409 = vadd.f32 %v280, %v408
    %v410 = vpop.f32.mrb[0].mxu0
    %411 = vmatprep.mubr.f32.mxu0 0.0
    %412 = vmatmul.mubr.f32.gmra.mrb[0].mxu0 %v312
    %v413 = vpop.f32.mrb[0].mxu0
    %v414 = vadd.f32 %v285, %v413
    %v415 = vpop.f32.mrb[0].mxu0
    %416 = vmatprep.mubr.f32.mxu0 0.0
    %417 = vmatmul.mubr.f32.gmra.mrb[0].mxu0 %v315
    %v418 = vpop.f32.mrb[0].mxu0
    %v419 = vadd.f32 %v290, %v418
    %v420 = vpop.f32.mrb[0].mxu0
    %421 = vdwg.mxu0
    %v422 = vmax.f32 %v384, 0.0
    %v423 = vmax.f32 %v389, 0.0
    %v424 = vmax.f32 %v394, 0.0
    %v425 = vmax.f32 %v399, 0.0
    %v426 = vmax.f32 %v404, 0.0
    %v427 = vmax.f32 %v409, 0.0
    %v428 = vmax.f32 %v414, 0.0
    %v429 = vmax.f32 %v419, 0.0
    %v430 = vld [vmem:[%s6] sm:$0xff]
    %v431 = vld [vmem:[%s6 + $0x8] sm:$0xff]
    %v432 = vld [vmem:[%s7] sm:$0xff]
    %v433 = vld [vmem:[%s7 + $0x8] sm:$0xff]
    %435 = vset.pattern.permute.xlu0 0
    %436 = vperm.xlu0 %435, %v432
    %v437 = vpop.permute.xlu0 %436
    %440 = vset.pattern.permute.xlu0 0
    %441 = vperm.xlu0 %440, %v433
    %v442 = vpop.permute.xlu0 %441
    %v445 = vsel %vm292, %v430, 0
    %v448 = vsel %vm292, %v431, 0
    %450 = vmatprep.subr.mxu0 0.0
    %451 = vmatpush1.msra.mxu0 %v422
    %452 = vmatprep.subr.mxu0 0.0
    %453 = vmatpush1.msra.mxu0 %v423
    %454 = vmatprep.subr.mxu0 0.0
    %455 = vmatpush1.msra.mxu0 %v424
    %456 = vmatprep.subr.mxu0 0.0
    %457 = vmatpush1.msra.mxu0 %v425
    %458 = vmatprep.subr.mxu0 0.0
    %459 = vmatpush1.msra.mxu0 %v426
    %460 = vmatprep.subr.mxu0 0.0
    %461 = vmatpush1.msra.mxu0 %v427
    %462 = vmatprep.subr.mxu0 0.0
    %463 = vmatpush1.msra.mxu0 %v428
    %464 = vmatprep.subr.mxu0 0.0
    %465 = vmatpush1.msra.mxu0 %v429
    %466 = vmatprep.subr.mxu0 0.0
    %467 = vmatpush1.msra.mxu0 0.0
    %468 = vmatprep.subr.mxu0 0.0
    %469 = vmatpush1.msra.mxu0 0.0
    %470 = vmatprep.subr.mxu0 0.0
    %471 = vmatpush1.msra.mxu0 0.0
    %472 = vmatprep.subr.mxu0 0.0
    %473 = vmatpush1.msra.mxu0 0.0
    %474 = vmatprep.subr.mxu0 0.0
    %475 = vmatpush1.msra.mxu0 0.0
    %476 = vmatprep.subr.mxu0 0.0
    %477 = vmatpush1.msra.mxu0 0.0
    %478 = vmatprep.subr.mxu0 0.0
    %479 = vmatpush1.msra.mxu0 0.0
    %480 = vmatprep.subr.mxu0 0.0
    %481 = vmatpush1.msra.mxu0 0.0
    %482 = vmatprep.subr.mxu0 0.0
    %483 = vmatpush1.msra.mxu0 0.0
    %484 = vmatprep.subr.mxu0 0.0
    %485 = vmatpush1.msra.mxu0 0.0
    %486 = vmatprep.subr.mxu0 0.0
    %487 = vmatpush1.msra.mxu0 0.0
    %488 = vmatprep.subr.mxu0 0.0
    %489 = vmatpush1.msra.mxu0 0.0
    %490 = vmatprep.subr.mxu0 0.0
    %491 = vmatpush1.msra.mxu0 0.0
    %492 = vmatprep.subr.mxu0 0.0
    %493 = vmatpush1.msra.mxu0 0.0
    %494 = vmatprep.subr.mxu0 0.0
    %495 = vmatpush1.msra.mxu0 0.0
    %496 = vmatprep.subr.mxu0 0.0
    %497 = vmatpush1.msra.mxu0 0.0
    %498 = vmatprep.subr.mxu0 0.0
    %499 = vmatpush1.msra.mxu0 0.0
    %500 = vmatprep.subr.mxu0 0.0
    %501 = vmatpush1.msra.mxu0 0.0
    %502 = vmatprep.subr.mxu0 0.0
    %503 = vmatpush1.msra.mxu0 0.0
    %504 = vmatprep.subr.mxu0 0.0
    %505 = vmatpush1.msra.mxu0 0.0
    %506 = vmatprep.subr.mxu0 0.0
    %507 = vmatpush1.msra.mxu0 0.0
    %508 = vmatprep.subr.mxu0 0.0
    %509 = vmatpush1.msra.mxu0 0.0
    %510 = vmatprep.subr.mxu0 0.0
    %511 = vmatpush1.msra.mxu0 0.0
    %512 = vmatprep.subr.mxu0 0.0
    %513 = vmatpush1.msra.mxu0 0.0
    %514 = vmatprep.mubr.f32.mxu0 0.0
    %515 = vmatmul.mubr.f32.gmra.mrb[0].mxu0 %v445
    %v516 = vpop.f32.mrb[0].mxu0
    %v517 = vadd.f32 %v437, %v516
    %v518 = vpop.f32.mrb[0].mxu0
    %519 = vmatprep.mubr.f32.mxu0 0.0
    %520 = vmatmul.mubr.f32.gmra.mrb[0].mxu0 %v448
    %v521 = vpop.f32.mrb[0].mxu0
    %v522 = vadd.f32 %v442, %v521
    %v523 = vpop.f32.mrb[0].mxu0
    %524 = vdwg.mxu0
    %v525 = vmul.f32 %v517, 1.442695
    %v526 = vpow.pop %v525
    %v527 = vmul.f32 %v33, %v526
    %v528 = vadd.f32 %v527, %v522
    %530 = vset.pattern.permute.xlu0 0
    %531 = vperm.xlu0 %530, %v35
    %v532 = vpop.permute.xlu0 %531
    %v534 = vmul.f32 %v532, %v528
    %v535 = vadd.f32 %v41, %v534
    %536 = vst [vmem:[#allocation2] sm:$0xff] %v535
    %v537 = vmul.f32 %v532, %v517
    %v538 = vrot.slane %v537, 4
    %v539 = vadd.f32 %v537, %v538
    %v540 = vrot.slane %v539, 2
    %v541 = vadd.f32 %v539, %v540
    %v542 = vrot.slane %v541, 1
    %v543 = vadd.f32 %v541, %v542
    %544 = vst [vmem:[#allocation4] sm:$0x1] %v543
    // Predicated region
    $region34: #{tpu_custom_call.1} parent=1 // pred_check
      _
    $region35: #{tpu_custom_call.1} parent=1 // pred_check_branch
      %546 = sbr.rel (0) target = $region37
    $region36: #{tpu_custom_call.1} parent=1 // pred_region
      %s548 = ssub.s32 128, 128
      %549 = vsyncadd [#allocation3], %s548
      %s551 = sshll.u32 [#allocation2], 4
      %s552 = int_to_ptr.vmem [resolvable:$true] %s551
      %554 = dma.vmem_to_hbm [thread:$0]  %s552, 128, %s8, [#allocation3]
    $region37: #{tpu_custom_call.1} parent=1 // pred_fallthru
      _
    // Predicated region
    $region38: #{tpu_custom_call.1} parent=1 // pred_check
      _
    $region39: #{tpu_custom_call.1} parent=1 // pred_check_branch
      %556 = sbr.rel (0) target = $region41
    $region40: #{tpu_custom_call.1} parent=1 // pred_region
      %s558 = ssub.s32 16, 16
      %559 = vsyncadd [#allocation5], %s558
      %s561 = sshll.u32 [#allocation4], 4
      %s562 = int_to_ptr.vmem [resolvable:$true] %s561
      %564 = dma.vmem_to_hbm [thread:$0]  %s562, 16, %s9, [#allocation5]
    $region41: #{tpu_custom_call.1} parent=1 // pred_fallthru
      _
    // Predicated region
    $region42: #{tpu_custom_call.1} parent=1 // pred_check
      _
    $region43: #{tpu_custom_call.1} parent=1 // pred_check_branch
      %566 = sbr.rel (0) target = $region45
    $region44: #{tpu_custom_call.1} parent=1 // pred_region
      %567 = dma.done [#allocation3], 128
    $region45: #{tpu_custom_call.1} parent=1 // pred_fallthru
      _
    // Predicated region
    $region46: #{tpu_custom_call.1} parent=1 // pred_check
      _
    $region47: #{tpu_custom_call.1} parent=1 // pred_check_branch
      %569 = sbr.rel (0) target = $region49
    $region48: #{tpu_custom_call.1} parent=1 // pred_region
      %570 = dma.done [#allocation5], 16
    $region49: #{tpu_custom_call.1} parent=1 // pred_fallthru
      _
    %571 = vsyncpa [#allocation3], 1
    %572 = vsyncpa [#allocation5], 1

</llo_original>
